<compile_context>
chip_gen: v5e
topology: v5e:2x2
jax: 0.10.0
libtpu: 0.0.40
codegen_flags: <defaults>
</compile_context>

<pallas_src>
import functools
import numpy as np

import jax
import jax.numpy as jnp
from jax import lax
from jax.experimental import pallas as pl
from jax.experimental.pallas import tpu as pltpu


def _sigmoid(x):
    # Numerically stable logistic (no inf intermediates for large |x|).
    e = jnp.exp(-jnp.abs(x))
    return jnp.where(x >= 0, 1.0 / (1.0 + e), e / (1.0 + e))


# --------------------------------------------------------------------------
# Kernel 1: static (non-time-varying) attention adjacency.
#   (V, D) mean -> Q/K projections -> scaled scores -> softmax(T) ->
#   symmetrize -> threshold -> diagonal = 1
# --------------------------------------------------------------------------
def _attn_adj_kernel(mean_ref, wq_ref, bq_ref, wk_ref, bk_ref, adj_ref, *,
                     attn_scale, temperature, threshold):
    mean = mean_ref[...]                                      # (V, D)
    q = jnp.dot(mean, wq_ref[...], preferred_element_type=jnp.float32) + bq_ref[...]
    k = jnp.dot(mean, wk_ref[...], preferred_element_type=jnp.float32) + bk_ref[...]
    s = lax.dot_general(q, k, (((1,), (1,)), ((), ())),
                        preferred_element_type=jnp.float32) / attn_scale   # (V, V)
    s = s / temperature
    s = s - jnp.max(s, axis=-1, keepdims=True)
    e = jnp.exp(s)
    s = e / jnp.sum(e, axis=-1, keepdims=True)                # softmax over last dim
    s = 0.5 * (s + s.T)                                       # symmetrize
    s = jnp.where(s >= threshold, s, jnp.zeros_like(s))       # threshold
    v = s.shape[0]
    eye = (lax.broadcasted_iota(jnp.int32, (v, v), 0)
           == lax.broadcasted_iota(jnp.int32, (v, v), 1))
    adj_ref[...] = jnp.where(eye, jnp.float32(1.0), s)        # diagonal = 1


def attention_adjacency(mean, wq, bq, wk, bk, *, attn_scale, temperature, threshold):
    V = mean.shape[0]
    kern = functools.partial(_attn_adj_kernel, attn_scale=attn_scale,
                             temperature=temperature, threshold=threshold)
    return pl.pallas_call(
        kern,
        out_shape=jax.ShapeDtypeStruct((V, V), jnp.float32),
    )(mean, wq, bq, wk, bk)


# --------------------------------------------------------------------------
# Kernel 2: edge_transform MLP (Linear -> SiLU -> Linear -> SiLU -> Linear)
#           + sigmoid + skip blend, computed densely over all V*V candidate
#           edges, tiled over (batch, time).
# --------------------------------------------------------------------------
def _edge_mlp_dense_kernel(scal_ref, hs_ref, ew_ref, w1s_ref, w1t_ref, w1e_ref,
                           b1_ref, w2_ref, b2_ref, w3_ref, out_ref):
    # hs_ref : (1, V, TL, D) hidden states for one (batch, time-tile) block.
    # ew_ref : (V*V*TL, 1) old edge weight adj[r, c] per row, rows ordered (r, c, t).
    _, V, TL, D = hs_ref.shape
    N = V * V * TL

    hs = hs_ref[0].reshape(V * TL, D)                         # (V*TL, D)

    # First Linear with the contraction split into src / tgt / edge-weight partials,
    # so the (N, 2D+1) feature matrix is never built and the per-vertex projections
    # are computed only once (V x fewer layer-1 MXU rows than the dense edge grid).
    p_src = jnp.dot(hs, w1s_ref[...], preferred_element_type=jnp.float32)   # (V*TL, D)
    p_tgt = jnp.dot(hs, w1t_ref[...], preferred_element_type=jnp.float32)   # (V*TL, D)

    src_rows = jnp.broadcast_to(p_src.reshape(V, 1, TL, D), (V, V, TL, D)).reshape(N, D)
    tgt_rows = jnp.broadcast_to(p_tgt.reshape(1, V, TL, D), (V, V, TL, D)).reshape(N, D)

    ew = ew_ref[...]                                          # (N, 1)
    h = src_rows + tgt_rows + ew * w1e_ref[...] + b1_ref[...]
    h = h * _sigmoid(h)                                       # SiLU

    h = jnp.dot(h, w2_ref[...], preferred_element_type=jnp.float32) + b2_ref[...]
    h = h * _sigmoid(h)                                       # SiLU, (N, H)

    # Final (H -> 1) Linear as a VPU multiply + lane reduction (no 1-wide MXU matmul).
    y = jnp.sum(h * w3_ref[...], axis=-1, keepdims=True) + scal_ref[0, 1]   # (N, 1)
    y = _sigmoid(y)

    skip = scal_ref[0, 0]
    out_ref[...] = (skip * ew + (1.0 - skip) * y)[None, None, :, :]


def _pick_time_tile(lp, cap=128):
    best = 8
    for t in range(8, min(lp, cap) + 1, 8):
        if lp % t == 0:
            best = t
    return best


def dense_edge_mlp(hs4, adj, params):
    """MLP edge transform over all V*V candidate edges -> (B, V, V, L) new weights."""
    B, V, L, D = hs4.shape
    H = params["w2"].shape[1]

    Lp = ((L + 7) // 8) * 8                    # pad time so blocks are sublane-aligned
    if Lp != L:
        hs4 = jnp.pad(hs4, ((0, 0), (0, 0), (0, Lp - L), (0, 0)))
    tl = _pick_time_tile(Lp)
    lt = Lp // tl
    N = V * V * tl

    # Per-row old edge weight, rows ordered (r, c, t); identical for every block.
    ew_col = jnp.broadcast_to(adj.reshape(V * V, 1, 1), (V * V, tl, 1)).reshape(N, 1)

    w1 = params["w1"]
    w1s, w1t, w1e = w1[:D], w1[D:2 * D], w1[2 * D:2 * D + 1]
    w3_row = jnp.transpose(params["w3"])                      # (1, H)
    scal = jnp.stack([jnp.asarray(params["skip"], jnp.float32),
                      params["b3"].reshape(())]).reshape(1, 2)

    out = pl.pallas_call(
        _edge_mlp_dense_kernel,
        out_shape=jax.ShapeDtypeStruct((B, lt, N, 1), jnp.float32),
        grid=(B, lt),
        in_specs=[
            pl.BlockSpec(memory_space=pltpu.MemorySpace.SMEM),        # [skip, b3]
            pl.BlockSpec((1, V, tl, D), lambda b, t: (b, 0, t, 0)),   # hidden states
            pl.BlockSpec((N, 1), lambda b, t: (0, 0)),                # old edge weights
            pl.BlockSpec((D, D), lambda b, t: (0, 0)),                # W1 (src half)
            pl.BlockSpec((D, D), lambda b, t: (0, 0)),                # W1 (tgt half)
            pl.BlockSpec((1, D), lambda b, t: (0, 0)),                # W1 (edge-w row)
            pl.BlockSpec((1, D), lambda b, t: (0, 0)),                # b1
            pl.BlockSpec((D, H), lambda b, t: (0, 0)),                # W2
            pl.BlockSpec((1, H), lambda b, t: (0, 0)),                # b2
            pl.BlockSpec((1, H), lambda b, t: (0, 0)),                # W3 row
        ],
        out_specs=pl.BlockSpec((1, 1, N, 1), lambda b, t: (b, t, 0, 0)),
        compiler_params=pltpu.CompilerParams(
            dimension_semantics=("parallel", "parallel")),
    )(scal, hs4, ew_col, w1s, w1t, w1e, params["b1"], params["w2"], params["b2"],
      w3_row)

    # (B, lt, V*V*tl, 1) -> (B, V, V, L)
    out = out.reshape(B, lt, V, V, tl)
    out = jnp.moveaxis(out, 1, 3).reshape(B, V, V, Lp)
    return out[..., :L]


# --------------------------------------------------------------------------
# EdgeLearner forward (use_attention=True, edge_learner_time_varying=True,
# attn_time_varying=False, edge_weight already time-varying i.e. 2-D).
# --------------------------------------------------------------------------
def edge_learner_forward(hidden_states, edge_index, edge_weight, params, cfg):
    V = cfg["num_vertices"]
    D = cfg["d_model"]
    B = hidden_states.shape[0] // V
    L = hidden_states.shape[1]

    # TODO(synk): the edge_weight.dim()<2 branch needs torch_geometric.to_dense_adj;
    # only the 2-D (time-varying) edge_weight path is exercised here.
    # TODO(synk): attn_time_varying=True (per-timestep dense_to_sparse with a dynamic
    # edge count per step) has no static-shape Pallas equivalent; not implemented.
    # TODO(synk): edge_index/edge_weight is None branch (random adjacency) not implemented.
    assert edge_weight.ndim == 2

    hs4 = hidden_states.reshape(B, V, L, D)

    # --- attention-based adjacency (Pallas kernel 1; mean is a trivial XLA reduce) ---
    mean = jnp.mean(hs4, axis=(0, 2))                         # (V, D)
    adj = attention_adjacency(
        mean, params["wq"], params["bq"], params["wk"], params["bk"],
        attn_scale=cfg["attn_scale"], temperature=cfg["temperature"],
        threshold=cfg["threshold"])

    # --- time-varying edge transform, dense over all V*V candidate edges (kernel 2).
    #     Dispatched before any host sync so the device pipeline is never serialized
    #     on the host-side dense_to_sparse. ---
    dense_w = dense_edge_mlp(hs4, adj, params)                # (B, V, V, L)

    # --- dense_to_sparse (data-dependent nnz -> host; overlaps with kernel 2 on
    #     device).  Adjacency is batch-invariant, exactly as in the module. ---
    adj_np = np.asarray(jax.device_get(adj))
    r_idx, c_idx = np.nonzero(adj_np)                         # (E,), row-major order
    E = int(r_idx.size)
    r_d = jnp.asarray(r_idx, dtype=jnp.int32)
    c_d = jnp.asarray(c_idx, dtype=jnp.int32)

    # Gather the learned weights of the active edges and build outputs on device.
    edge_weight_out = dense_w[:, r_d, c_d, :].reshape(B * E, L)        # (B*E, L)
    base = V * jnp.arange(B, dtype=jnp.int32)[:, None]
    row = (r_d[None, :] + base).reshape(-1)
    col = (c_d[None, :] + base).reshape(-1)
    edge_index_out = jnp.broadcast_to(
        jnp.stack([row, col])[:, :, None], (2, B * E, L))              # (2, B*E, L)
    return edge_index_out, edge_weight_out


# --------------------------------------------------------------------------
# Pure-jnp references (correctness check only).
# --------------------------------------------------------------------------
def _ref_adj(mean, wq, bq, wk, bk, scale, temp, thr):
    q = mean @ wq + bq
    k = mean @ wk + bk
    s = (q @ k.T) / scale
    s = jax.nn.softmax(s / temp, axis=-1)
    s = 0.5 * (s + s.T)
    s = jnp.where(s >= thr, s, 0.0)
    v = s.shape[0]
    return jnp.where(jnp.eye(v, dtype=bool), 1.0, s)


def _ref_edge_weights(hs4, adj, r_idx, c_idx, w1, b1, w2, b2, w3, b3, skip):
    B, V, L, D = hs4.shape
    src = hs4[:, r_idx]                                       # (B, E, L, D)
    tgt = hs4[:, c_idx]
    ew = adj[r_idx, c_idx]                                    # (E,)
    ew_b = jnp.broadcast_to(ew[None, :, None], (B, ew.shape[0], L))
    feat = jnp.concatenate([src, tgt, ew_b[..., None]], axis=-1)       # (B,E,L,2D+1)
    h = feat @ w1 + b1
    h = h * jax.nn.sigmoid(h)
    h = h @ w2 + b2
    h = h * jax.nn.sigmoid(h)
    y = jax.nn.sigmoid(h @ w3 + b3)[..., 0]                   # (B, E, L)
    out = skip * ew_b + (1.0 - skip) * y
    return out.reshape(-1, L)


# --------------------------------------------------------------------------
if __name__ == "__main__":
    B, V, L, D = 2, 8, 8, 32
    cfg = dict(d_model=D, num_vertices=V,
               attn_scale=float(np.sqrt(D)), temperature=0.01, threshold=0.1)

    key = jax.random.PRNGKey(0)
    keys = jax.random.split(key, 16)

    def linear(kw, kb, fan_in, fan_out):
        bound = 1.0 / np.sqrt(fan_in)
        w = jax.random.uniform(kw, (fan_in, fan_out), jnp.float32, -bound, bound)
        b = jax.random.uniform(kb, (1, fan_out), jnp.float32, -bound, bound)
        return w, b

    wq, bq = linear(keys[0], keys[1], D, 4 * D)          # Q_proj
    wk, bk = linear(keys[2], keys[3], D, 4 * D)          # K_proj
    w1, b1 = linear(keys[4], keys[5], 2 * D + 1, D)      # edge_transform[0]
    w2, b2 = linear(keys[6], keys[7], D, D // 2)         # edge_transform[2]
    w3, b3 = linear(keys[8], keys[9], D // 2, 1)         # edge_transform[4]
    params = dict(wq=wq, bq=bq, wk=wk, bk=bk,
                  w1=w1, b1=b1, w2=w2, b2=b2, w3=w3, b3=b3, skip=0.25)

    hidden_states = jax.random.normal(keys[10], (B * V, L, D), jnp.float32)

    # Time-varying edge inputs (values unused on this config path, but the module
    # signature requires them and their rank selects the code path).
    E0 = 10
    edge_index_in = jax.random.randint(keys[11], (2, B * E0, L), 0, B * V, jnp.int32)
    edge_weight_in = jax.random.uniform(keys[12], (B * E0, L), jnp.float32)

    edge_index_out, edge_weight_out = edge_learner_forward(
        hidden_states, edge_index_in, edge_weight_in, params, cfg)
    edge_weight_out = jax.block_until_ready(edge_weight_out)
    edge_index_out = jax.block_until_ready(edge_index_out)

    # --- module output-shape contract ---
    assert edge_index_out.ndim == 3 and edge_index_out.shape[0] == 2
    assert edge_index_out.shape[-1] == L
    assert edge_weight_out.ndim == 2 and edge_weight_out.shape[-1] == L
    assert edge_weight_out.shape[0] == edge_index_out.shape[1]

    # --- numerical check against a pure-jnp reference of the same forward path ---
    hs4 = hidden_states.reshape(B, V, L, D)
    mean = jnp.mean(hs4, axis=(0, 2))

    adj_k = attention_adjacency(mean, wq, bq, wk, bk,
                                attn_scale=cfg["attn_scale"],
                                temperature=cfg["temperature"],
                                threshold=cfg["threshold"])
    adj_r = _ref_adj(mean, wq, bq, wk, bk, cfg["attn_scale"],
                     cfg["temperature"], cfg["threshold"])
    np.testing.assert_allclose(np.asarray(adj_k), np.asarray(adj_r),
                               rtol=2e-3, atol=2e-3)

    adj_k_np = np.asarray(adj_k)
    r_idx, c_idx = np.nonzero(adj_k_np)
    ew_ref = _ref_edge_weights(hs4, adj_k, jnp.asarray(r_idx), jnp.asarray(c_idx),
                               w1, b1, w2, b2, w3, b3, 0.25)
    np.testing.assert_allclose(np.asarray(edge_weight_out), np.asarray(ew_ref),
                               rtol=2e-3, atol=2e-3)

    base_np = V * np.arange(B, dtype=np.int64)[:, None]
    row_ref = (r_idx[None, :] + base_np).reshape(-1)
    col_ref = (c_idx[None, :] + base_np).reshape(-1)
    ei_ref = np.broadcast_to(np.stack([row_ref, col_ref])[:, :, None],
                             (2, row_ref.size, L))
    np.testing.assert_array_equal(np.asarray(edge_index_out), ei_ref)

    print("KERNEL_OK")
</pallas_src>

<mosaic_0001>
module attributes {stable_mosaic.version = 11 : i64} {
  func.func @_attn_adj_kernel(%arg0: memref<8x32xf32, #tpu.memory_space<vmem>>, %arg1: memref<32x128xf32, #tpu.memory_space<vmem>>, %arg2: memref<1x128xf32, #tpu.memory_space<vmem>>, %arg3: memref<32x128xf32, #tpu.memory_space<vmem>>, %arg4: memref<1x128xf32, #tpu.memory_space<vmem>>, %arg5: memref<8x8xf32, #tpu.memory_space<vmem>>) attributes {dimension_semantics = [], scalar_prefetch = 0 : i64, scratch_operands = 0 : i64, tpu.core_type = #tpu.core_type<tc>} {
    %c0 = arith.constant 0 : index
    %c0_0 = arith.constant 0 : index
    %0 = vector.load %arg0[%c0, %c0_0] : memref<8x32xf32, #tpu.memory_space<vmem>>, vector<8x32xf32>
    %c0_1 = arith.constant 0 : index
    %c0_2 = arith.constant 0 : index
    %1 = vector.load %arg1[%c0_1, %c0_2] : memref<32x128xf32, #tpu.memory_space<vmem>>, vector<32x128xf32>
    %cst = arith.constant dense<0.000000e+00> : vector<8x128xf32>
    %2 = tpu.matmul %0, %1, %cst {dimension_numbers = #tpu.dot_dimension_numbers<[1], [0], [0], [1], [0, 0, 1, 1], [], []>} : vector<8x32xf32>, vector<32x128xf32>, vector<8x128xf32> -> vector<8x128xf32>
    %c0_3 = arith.constant 0 : index
    %c0_4 = arith.constant 0 : index
    %3 = vector.load %arg2[%c0_3, %c0_4] : memref<1x128xf32, #tpu.memory_space<vmem>>, vector<1x128xf32>
    %4 = vector.broadcast %3 : vector<1x128xf32> to vector<8x128xf32>
    %5 = arith.addf %2, %4 : vector<8x128xf32>
    %c0_5 = arith.constant 0 : index
    %c0_6 = arith.constant 0 : index
    %6 = vector.load %arg3[%c0_5, %c0_6] : memref<32x128xf32, #tpu.memory_space<vmem>>, vector<32x128xf32>
    %cst_7 = arith.constant dense<0.000000e+00> : vector<8x128xf32>
    %7 = tpu.matmul %0, %6, %cst_7 {dimension_numbers = #tpu.dot_dimension_numbers<[1], [0], [0], [1], [0, 0, 1, 1], [], []>} : vector<8x32xf32>, vector<32x128xf32>, vector<8x128xf32> -> vector<8x128xf32>
    %c0_8 = arith.constant 0 : index
    %c0_9 = arith.constant 0 : index
    %8 = vector.load %arg4[%c0_8, %c0_9] : memref<1x128xf32, #tpu.memory_space<vmem>>, vector<1x128xf32>
    %9 = vector.broadcast %8 : vector<1x128xf32> to vector<8x128xf32>
    %10 = arith.addf %7, %9 : vector<8x128xf32>
    %cst_10 = arith.constant dense<0.000000e+00> : vector<8x8xf32>
    %11 = tpu.matmul %5, %10, %cst_10 {dimension_numbers = #tpu.dot_dimension_numbers<[1], [1], [0], [0], [0, 0, 1, 0], [], []>} : vector<8x128xf32>, vector<8x128xf32>, vector<8x8xf32> -> vector<8x8xf32>
    %cst_11 = arith.constant 5.65685415 : f32
    %12 = vector.broadcast %cst_11 : f32 to vector<8x8xf32>
    %13 = arith.divf %11, %12 : vector<8x8xf32>
    %cst_12 = arith.constant 0.00999999977 : f32
    %14 = vector.broadcast %cst_12 : f32 to vector<8x8xf32>
    %15 = arith.divf %13, %14 : vector<8x8xf32>
    %cst_13 = arith.constant dense<0xFF800000> : vector<8xf32>
    %16 = vector.multi_reduction <maximumf>, %15, %cst_13 [1] : vector<8x8xf32> to vector<8xf32>
    %17 = vector.shape_cast %16 : vector<8xf32> to vector<8x1xf32>
    %18 = vector.broadcast %17 : vector<8x1xf32> to vector<8x8xf32>
    %19 = arith.subf %15, %18 : vector<8x8xf32>
    %20 = math.exp %19 : vector<8x8xf32>
    %cst_14 = arith.constant dense<0.000000e+00> : vector<8xf32>
    %21 = vector.multi_reduction <add>, %20, %cst_14 [1] : vector<8x8xf32> to vector<8xf32>
    %22 = vector.shape_cast %21 : vector<8xf32> to vector<8x1xf32>
    %23 = vector.broadcast %22 : vector<8x1xf32> to vector<8x8xf32>
    %24 = arith.divf %20, %23 : vector<8x8xf32>
    %25 = tpu.transpose %24, [1, 0] : vector<8x8xf32> -> vector<8x8xf32>
    %26 = arith.addf %24, %25 : vector<8x8xf32>
    %cst_15 = arith.constant 5.000000e-01 : f32
    %27 = vector.broadcast %cst_15 : f32 to vector<8x8xf32>
    %28 = arith.mulf %27, %26 : vector<8x8xf32>
    %cst_16 = arith.constant 1.000000e-01 : f32
    %29 = vector.broadcast %cst_16 : f32 to vector<8x8xf32>
    %30 = arith.cmpf oge, %28, %29 : vector<8x8xf32>
    %cst_17 = arith.constant 0.000000e+00 : f32
    %31 = vector.broadcast %cst_17 : f32 to vector<8x8xf32>
    %32 = arith.select %30, %28, %31 : vector<8x8xi1>, vector<8x8xf32>
    %33 = tpu.iota {dimensions = array<i32: 0>} : vector<8x8xi32>
    %34 = tpu.iota {dimensions = array<i32: 1>} : vector<8x8xi32>
    %35 = arith.cmpi eq, %33, %34 : vector<8x8xi32>
    %cst_18 = arith.constant 1.000000e+00 : f32
    %36 = vector.broadcast %cst_18 : f32 to vector<8x8xf32>
    %37 = arith.select %35, %36, %32 : vector<8x8xi1>, vector<8x8xf32>
    %c0_19 = arith.constant 0 : index
    %c0_20 = arith.constant 0 : index
    %38 = vector.load %arg5[%c0_19, %c0_20] : memref<8x8xf32, #tpu.memory_space<vmem>>, vector<8x8xf32>
    tpu.vector_store %arg5[%c0_19, %c0_20], %37 {strides = array<i32>} : memref<8x8xf32, #tpu.memory_space<vmem>>, vector<8x8xf32>,
    return
  }
}

</mosaic_0001>

<llo_original>
// kernel: tpu_custom_call.1
$region0: #{tpu_custom_call.1}
  #allocation0 [shape = 'u32[]', space=smem, size = 0x4, offset = 0x4, fixed_abs, tag = 'smem constant byte address 0x4 - core index']
  #allocation1 [shape = 'u32[72,128]{1,0:T(1,128)}', space=vmem, size = 0x9000, scoped, tag = 'internal scratch']
  %s0 = inlined_call_operand.hbm [shape: f32[8,32], index: 0, kind: input, shape index: {}]
  %s1 = inlined_call_operand.hbm [shape: f32[32,128], index: 1, kind: input, shape index: {}]
  %s2 = inlined_call_operand.vmem [shape: f32[1,128], index: 2, kind: input, shape index: {}]
  %s3 = inlined_call_operand.hbm [shape: f32[32,128], index: 3, kind: input, shape index: {}]
  %s4 = inlined_call_operand.vmem [shape: f32[1,128], index: 4, kind: input, shape index: {}]
  %s5 = inlined_call_operand.hbm [shape: f32[8,8], index: 5, kind: output, shape index: {}]
  %s6 = sld [smem:[#allocation0]]
  $region42: #{tpu_custom_call.1} parent=0
    _
  %s8 = ssub.s32 1, %s6
  %s9 = scalar_select 0, %s8, %s6
  $region1: #{tpu_custom_call.1} parent=0
    #allocation2 [shape = 'u8[4096]{0}', space=vmem, size = 0x1000, scoped, tag = 'input window, operand 0, single buffered']
    #allocation3 [shape = 's32[1]{0}', space=sflag, size = 0x4, scoped, tag = 'scoped memory for tpu_custom_call.1']
    #allocation4 [shape = 's32[1]{0}', space=sflag, size = 0x4, scoped, tag = 'scoped memory for tpu_custom_call.1']
    #allocation5 [shape = 'u8[16384]{0}', space=vmem, size = 0x4000, scoped, tag = 'input window, operand 1, single buffered']
    #allocation6 [shape = 's32[1]{0}', space=sflag, size = 0x4, scoped, tag = 'scoped memory for tpu_custom_call.1']
    #allocation7 [shape = 'u8[16384]{0}', space=vmem, size = 0x4000, scoped, tag = 'input window, operand 3, single buffered']
    #allocation8 [shape = 'u8[4096]{0}', space=vmem, size = 0x1000, scoped, tag = 'output window, operand 0, single buffered']
    %10 = vsyncpa [#allocation3], 0
    %11 = vsyncpa [#allocation6], 0
    %12 = vsyncpa [#allocation4], 0
    // Predicated region
    $region2: #{tpu_custom_call.1} parent=1 // pred_check
      _
    $region3: #{tpu_custom_call.1} parent=1 // pred_check_branch
      %14 = sbr.rel (0) target = $region5
    $region4: #{tpu_custom_call.1} parent=1 // pred_region
      %16 = vsyncadd [#allocation3], 0
      %s18 = sshll.u32 %s0, 4
      %s19 = int_to_ptr.hbm [resolvable:$true] %s18
      %s20 = sshll.u32 [#allocation2], 4
      %s21 = int_to_ptr.vmem [resolvable:$true] %s20
      %23 = dma.hbm_to_vmem [thread:$0]  %s19, 128, %s21, [#allocation3]
    $region5: #{tpu_custom_call.1} parent=1 // pred_fallthru
      _
    // Predicated region
    $region6: #{tpu_custom_call.1} parent=1 // pred_check
      _
    $region7: #{tpu_custom_call.1} parent=1 // pred_check_branch
      %25 = sbr.rel (0) target = $region9
    $region8: #{tpu_custom_call.1} parent=1 // pred_region
      %27 = vsyncadd [#allocation6], 0
      %s28 = sshll.u32 %s1, 4
      %s29 = int_to_ptr.hbm [resolvable:$true] %s28
      %s30 = sshll.u32 [#allocation5], 4
      %s31 = int_to_ptr.vmem [resolvable:$true] %s30
      %36 = dma.hbm_to_vmem [thread:$0]  %s29, 512, %s31, [#allocation6], 128, 128, 8
    $region9: #{tpu_custom_call.1} parent=1 // pred_fallthru
      _
    // Predicated region
    $region10: #{tpu_custom_call.1} parent=1 // pred_check
      _
    $region11: #{tpu_custom_call.1} parent=1 // pred_check_branch
      %38 = sbr.rel (0) target = $region13
    $region12: #{tpu_custom_call.1} parent=1 // pred_region
      _
    $region13: #{tpu_custom_call.1} parent=1 // pred_fallthru
      _
    // Predicated region
    $region14: #{tpu_custom_call.1} parent=1 // pred_check
      _
    $region15: #{tpu_custom_call.1} parent=1 // pred_check_branch
      %40 = sbr.rel (0) target = $region17
    $region16: #{tpu_custom_call.1} parent=1 // pred_region
      %42 = vsyncadd [#allocation6], 0
      %s43 = sshll.u32 %s3, 4
      %s44 = int_to_ptr.hbm [resolvable:$true] %s43
      %s45 = sshll.u32 [#allocation7], 4
      %s46 = int_to_ptr.vmem [resolvable:$true] %s45
      %51 = dma.hbm_to_vmem [thread:$0]  %s44, 512, %s46, [#allocation6], 128, 128, 8
    $region17: #{tpu_custom_call.1} parent=1 // pred_fallthru
      _
    // Predicated region
    $region18: #{tpu_custom_call.1} parent=1 // pred_check
      _
    $region19: #{tpu_custom_call.1} parent=1 // pred_check_branch
      %53 = sbr.rel (0) target = $region21
    $region20: #{tpu_custom_call.1} parent=1 // pred_region
      _
    $region21: #{tpu_custom_call.1} parent=1 // pred_fallthru
      _
    // Predicated region
    $region22: #{tpu_custom_call.1} parent=1 // pred_check
      _
    $region23: #{tpu_custom_call.1} parent=1 // pred_check_branch
      %55 = sbr.rel (0) target = $region25
    $region24: #{tpu_custom_call.1} parent=1 // pred_region
      %57 = dma.done [#allocation3], 128
    $region25: #{tpu_custom_call.1} parent=1 // pred_fallthru
      _
    // Predicated region
    $region26: #{tpu_custom_call.1} parent=1 // pred_check
      _
    $region27: #{tpu_custom_call.1} parent=1 // pred_check_branch
      %59 = sbr.rel (0) target = $region29
    $region28: #{tpu_custom_call.1} parent=1 // pred_region
      %61 = dma.done [#allocation6], 512
    $region29: #{tpu_custom_call.1} parent=1 // pred_fallthru
      _
    // Predicated region
    $region30: #{tpu_custom_call.1} parent=1 // pred_check
      _
    $region31: #{tpu_custom_call.1} parent=1 // pred_check_branch
      %63 = sbr.rel (0) target = $region33
    $region32: #{tpu_custom_call.1} parent=1 // pred_region
      %65 = dma.done [#allocation6], 512
    $region33: #{tpu_custom_call.1} parent=1 // pred_fallthru
      _
    %v66 = vld [vmem:[#allocation2] sm:$0xff]
    %v67 = vld [vmem:[#allocation5] sm:$0xff]
    %v68 = vld [vmem:[#allocation5 + $0x8] sm:$0xff]
    %v69 = vld [vmem:[#allocation5 + $0x10] sm:$0xff]
    %v70 = vld [vmem:[#allocation5 + $0x18] sm:$0xff]
    %v71 = vld [vmem:[%s2] sm:$0x1]
    %v73 = vperm.slane %v71, 0
    %vm75 = vcmask 261120
    %v77 = vsel %vm75, %v66, 0
    %79 = vmatpush.msra.mxu0 0.0
    %80 = vmatpush.msra.mxu0 0.0
    %81 = vmatpush.msra.mxu0 0.0
    %82 = vmatpush.msra.mxu0 0.0
    %83 = vmatpush.msra.mxu0 0.0
    %84 = vmatpush.msra.mxu0 0.0
    %85 = vmatpush.msra.mxu0 0.0
    %86 = vmatpush.msra.mxu0 0.0
    %87 = vmatpush.msra.mxu0 0.0
    %88 = vmatpush.msra.mxu0 0.0
    %89 = vmatpush.msra.mxu0 0.0
    %90 = vmatpush.msra.mxu0 0.0
    %91 = vmatpush.msra.mxu0 %v70
    %92 = vmatpush.msra.mxu0 %v69
    %93 = vmatpush.msra.mxu0 %v68
    %94 = vmatpush.msra.mxu0 %v67
    %95 = vmatmul.f32.gmra.mxu0 %v77
    %v96 = vpop.f32.mrf.mxu0
    %v97 = vadd.f32 %v73, %v96
    %98 = vdwg.mxu0
    %v99 = vld [vmem:[#allocation7] sm:$0xff]
    %v100 = vld [vmem:[#allocation7 + $0x8] sm:$0xff]
    %v101 = vld [vmem:[#allocation7 + $0x10] sm:$0xff]
    %v102 = vld [vmem:[#allocation7 + $0x18] sm:$0xff]
    %v103 = vld [vmem:[%s4] sm:$0x1]
    %v105 = vperm.slane %v103, 0
    %107 = vmatpush.msra.mxu0 0.0
    %108 = vmatpush.msra.mxu0 0.0
    %109 = vmatpush.msra.mxu0 0.0
    %110 = vmatpush.msra.mxu0 0.0
    %111 = vmatpush.msra.mxu0 0.0
    %112 = vmatpush.msra.mxu0 0.0
    %113 = vmatpush.msra.mxu0 0.0
    %114 = vmatpush.msra.mxu0 0.0
    %115 = vmatpush.msra.mxu0 0.0
    %116 = vmatpush.msra.mxu0 0.0
    %117 = vmatpush.msra.mxu0 0.0
    %118 = vmatpush.msra.mxu0 0.0
    %119 = vmatpush.msra.mxu0 %v102
    %120 = vmatpush.msra.mxu0 %v101
    %121 = vmatpush.msra.mxu0 %v100
    %122 = vmatpush.msra.mxu0 %v99
    %123 = vmatmul.f32.gmra.mxu0 %v77
    %v124 = vpop.f32.mrf.mxu0
    %v125 = vadd.f32 %v105, %v124
    %126 = vdwg.mxu0
    %127 = vmatpush.xpose.msra.mxu0 0.0
    %128 = vmatpush.xpose.msra.mxu0 0.0
    %129 = vmatpush.xpose.msra.mxu0 0.0
    %130 = vmatpush.xpose.msra.mxu0 0.0
    %131 = vmatpush.xpose.msra.mxu0 0.0
    %132 = vmatpush.xpose.msra.mxu0 0.0
    %133 = vmatpush.xpose.msra.mxu0 0.0
    %134 = vmatpush.xpose.msra.mxu0 0.0
    %135 = vmatpush.xpose.msra.mxu0 0.0
    %136 = vmatpush.xpose.msra.mxu0 0.0
    %137 = vmatpush.xpose.msra.mxu0 0.0
    %138 = vmatpush.xpose.msra.mxu0 0.0
    %139 = vmatpush.xpose.msra.mxu0 0.0
    %140 = vmatpush.xpose.msra.mxu0 0.0
    %141 = vmatpush.xpose.msra.mxu0 0.0
    %142 = vmatpush.xpose.msra.mxu0 %v125
    %143 = vmatmul.f32.gmra.mxu0 %v97
    %v144 = vpop.f32.mrf.mxu0
    %v145 = vadd.f32 0.0, %v144
    %146 = vdwg.mxu0
    %v147 = vrcp.pop 5.656854
    %v148 = vmul.f32 5.656854, %v147
    %v149 = vsub.f32 1.0, %v148
    %v150 = vmul.f32 %v147, %v149
    %v151 = vadd.f32 %v147, %v150
    %vm152 = vweird.f32 %v147
    %v153 = vsel %vm152, %v147, %v151
    %v154 = vmul.f32 %v145, %v153
    %v155 = vrcp.pop 0.01
    %v156 = vmul.f32 0.01, %v155
    %v157 = vsub.f32 1.0, %v156
    %v158 = vmul.f32 %v155, %v157
    %v159 = vadd.f32 %v155, %v158
    %vm160 = vweird.f32 %v155
    %v161 = vsel %vm160, %v155, %v159
    %v162 = vmul.f32 %v154, %v161
    %vm163 = vcmask 64512
    %v164 = vsel %vm163, %v162, -inf
    %165 = vmax.xlane.f32.xlu0 %v164
    %v166 = vpop.xlane.xlu0 %165
    %v167 = vsub.f32 %v162, %v166
    %v168 = vmul.f32 %v167, 1.442695
    %v169 = vpow.pop %v168
    %v170 = vsel %vm163, %v169, 0.0
    %171 = vadd.xlane.f32.xlu0 %v170
    %v172 = vpop.xlane.xlu0 %171
    %v173 = vrcp.pop %v172
    %v174 = vmul.f32 %v172, %v173
    %v175 = vsub.f32 1.0, %v174
    %v176 = vmul.f32 %v173, %v175
    %v177 = vadd.f32 %v173, %v176
    %vm178 = vweird.f32 %v172
    %vm179 = vweird.f32 %v173
    %vm180 = vmor %vm178, %vm179
    %v181 = vsel %vm180, %v173, %v177
    %v182 = vand.u32 2147483647, %v172
    %vm183 = vcmp.eq.f32.partialorder %v182, 8.507059e+37
    %v184 = vand.u32 %v172, 2147483648
    %v185 = vor.u32 1.1754944e-38, %v184
    %v186 = vsel %vm183, %v185, %v181
    %v187 = vmul.f32 %v169, %v186
    %188 = vxpose.xlu0.b32.start [1/16] %v187, 128
    %189 = vxpose.xlu0.b32.cont [2/16] 0.0, 128
    %190 = vxpose.xlu0.b32.cont [3/16] 0.0, 128
    %191 = vxpose.xlu0.b32.cont [4/16] 0.0, 128
    %192 = vxpose.xlu0.b32.cont [5/16] 0.0, 128
    %193 = vxpose.xlu0.b32.cont [6/16] 0.0, 128
    %194 = vxpose.xlu0.b32.cont [7/16] 0.0, 128
    %195 = vxpose.xlu0.b32.cont [8/16] 0.0, 128
    %196 = vxpose.xlu0.b32.cont [9/16] 0.0, 128
    %197 = vxpose.xlu0.b32.cont [10/16] 0.0, 128
    %198 = vxpose.xlu0.b32.cont [11/16] 0.0, 128
    %199 = vxpose.xlu0.b32.cont [12/16] 0.0, 128
    %200 = vxpose.xlu0.b32.cont [13/16] 0.0, 128
    %201 = vxpose.xlu0.b32.cont [14/16] 0.0, 128
    %202 = vxpose.xlu0.b32.cont [15/16] 0.0, 128
    %203 = vxpose.xlu0.b32.end [16/16] 0.0, 128
    %v204 = vpop.trf.xlu0
    %v205 = vpop.trf.xlu0
    %v206 = vpop.trf.xlu0
    %v207 = vpop.trf.xlu0
    %v208 = vpop.trf.xlu0
    %v209 = vpop.trf.xlu0
    %v210 = vpop.trf.xlu0
    %v211 = vpop.trf.xlu0
    %v212 = vpop.trf.xlu0
    %v213 = vpop.trf.xlu0
    %v214 = vpop.trf.xlu0
    %v215 = vpop.trf.xlu0
    %v216 = vpop.trf.xlu0
    %v217 = vpop.trf.xlu0
    %v218 = vpop.trf.xlu0
    %v219 = vpop.trf.xlu0
    %v220 = vadd.f32 %v187, %v204
    %v221 = vmul.f32 %v220, 0.5
    %vm222 = vcmp.ge.f32.partialorder %v221, 0.1
    %v223 = vsel %vm222, %v221, 0.0
    %v224 = vlaneseq
    %v225 = vshrl.u32 %v224, 7
    %v226 = vlaneseq
    %v227 = vand.u32 %v226, 127
    %vm228 = vcmp.eq.s32.totalorder %v225, %v227
    %v229 = vsel %vm228, 1.0, %v223
    %230 = vst.msk [vmem:[#allocation8] sm:$0xff] %vm163, %v229
    // Predicated region
    $region34: #{tpu_custom_call.1} parent=1 // pred_check
      _
    $region35: #{tpu_custom_call.1} parent=1 // pred_check_branch
      %232 = sbr.rel (0) target = $region37
    $region36: #{tpu_custom_call.1} parent=1 // pred_region
      %234 = vsyncadd [#allocation4], 0
      %s236 = sshll.u32 [#allocation8], 4
      %s237 = int_to_ptr.vmem [resolvable:$true] %s236
      %s238 = sshll.u32 %s5, 4
      %s239 = int_to_ptr.hbm [resolvable:$true] %s238
      %241 = dma.vmem_to_hbm [thread:$0]  %s237, 128, %s239, [#allocation4]
    $region37: #{tpu_custom_call.1} parent=1 // pred_fallthru
      _
    // Predicated region
    $region38: #{tpu_custom_call.1} parent=1 // pred_check
      _
    $region39: #{tpu_custom_call.1} parent=1 // pred_check_branch
      %243 = sbr.rel (0) target = $region41
    $region40: #{tpu_custom_call.1} parent=1 // pred_region
      %245 = dma.done [#allocation4], 128
    $region41: #{tpu_custom_call.1} parent=1 // pred_fallthru
      _
    %246 = vsyncpa [#allocation3], 1
    %247 = vsyncpa [#allocation6], 1
    %248 = vsyncpa [#allocation4], 1

</llo_original>
